<compile_context>
chip_gen: v6e
topology: v6e:2x2x1
jax: 0.10.0
libtpu: 0.0.40
codegen_flags: <defaults>
</compile_context>

<pallas_src>
import jax
import jax.numpy as jnp
from jax.experimental import pallas as pl
from jax.experimental.pallas import tpu as pltpu


def _round_up(x, m):
    return (x + m - 1) // m * m


def _make_kernel(*, N, HW, tb, tile_c, slab, nslab, rs, cs, split, per_core):
    """Builds the |x - y| block-sum kernel with static tiling constants."""
    row_ragged = (rs * tb) != N          # last row block hangs past N
    lane_ragged = (cs * tile_c) != HW    # last column tile hangs past HW
    if split == "rows":
        overlap_gate = (2 * per_core) != rs
    elif split == "cols":
        overlap_gate = (2 * per_core) != cs
    else:
        overlap_gate = False

    def kernel(x_ref, y_ref, out_ref, acc_ref, yrep_ref):
        c = pl.program_id(0)   # "parallel" core-split axis
        j = pl.program_id(1)   # column-tile axis (per core)
        i = pl.program_id(2)   # row-block axis (per core)

        # Actual (always in-range) block indices.  Core 0 walks the split
        # axis from the front, core 1 from the back.
        if split == "rows":
            row_blk = c * (rs - 1) + (1 - 2 * c) * i
            col_tile = j
        elif split == "cols":
            row_blk = i
            col_tile = c * (cs - 1) + (1 - 2 * c) * j
        else:
            row_blk = i
            col_tile = j

        @pl.when((j == 0) & (i == 0))
        def _init():
            acc_ref[...] = jnp.zeros_like(acc_ref)

        # Replicate the (1, tile_c) label tile across sublanes once per
        # column tile instead of broadcasting it on every row block.
        @pl.when(i == 0)
        def _replicate_labels():
            yrep_ref[...] = jnp.broadcast_to(
                y_ref[...].astype(jnp.float32), yrep_ref.shape)

        def accumulate(masked):
            y32 = yrep_ref[...]

            def add_slab(s):
                r0 = s * slab
                if nslab > 1:
                    r0 = pl.multiple_of(r0, slab)
                    xs = x_ref[pl.ds(r0, slab), :].astype(jnp.float32)
                else:
                    xs = x_ref[...].astype(jnp.float32)
                d = jnp.abs(xs - y32)
                if masked:
                    ok = None
                    if row_ragged:
                        rows = (row_blk * tb + r0
                                + jax.lax.broadcasted_iota(
                                    jnp.int32, (slab, tile_c), 0))
                        ok = rows < N
                    if lane_ragged:
                        lanes = (col_tile * tile_c
                                 + jax.lax.broadcasted_iota(
                                     jnp.int32, (slab, tile_c), 1))
                        lok = lanes < HW
                        ok = lok if ok is None else (ok & lok)
                    d = jnp.where(ok, d, 0.0)
                acc_ref[...] += d

            if nslab == 1:
                add_slab(0)
            else:
                def body(s, carry):
                    add_slab(s)
                    return carry
                jax.lax.fori_loop(0, nslab, body, 0, unroll=nslab <= 8)

        def dispatch():
            if row_ragged or lane_ragged:
                boundary = None
                if row_ragged:
                    boundary = row_blk == rs - 1
                if lane_ragged:
                    lb = col_tile == cs - 1
                    boundary = lb if boundary is None else (boundary | lb)

                @pl.when(boundary)
                def _masked():
                    accumulate(True)

                @pl.when(jnp.logical_not(boundary))
                def _clean():
                    accumulate(False)
            else:
                accumulate(False)

        if overlap_gate:
            split_blk = row_blk if split == "rows" else col_tile
            valid = (c == 0) | (split_blk >= per_core)

            @pl.when(valid)
            def _valid():
                dispatch()
        else:
            dispatch()

        @pl.when((j == pl.num_programs(1) - 1) & (i == pl.num_programs(2) - 1))
        def _finalize():
            # Single cross-lane reduce + narrow store, once per core.
            out_ref[...] = jnp.sum(acc_ref[...]).reshape(1, 1, 1)

    return kernel


def skeleton_based_loss(x_output, y_labels, *, tile_max=16384,
                        target_block_bytes=None):
    """JAX/Pallas equivalent of the PyTorch module's forward pass.

    x_output: (N, H, W) (or (H, W)) array, any float dtype
    y_labels: (H, W) array (numpy labels in the PyTorch code)
    returns:  scalar float32 loss = mean(|x_output - y_labels[None]|)
    """
    x = jnp.asarray(x_output)
    if x.ndim == 2:
        x = x[None]
    # Same label handling as the module: (H,W) -> (H,W,1) -> (1,H,W), float.
    y = jnp.asarray(y_labels).astype(jnp.float32)[..., None]
    y = jnp.transpose(y, (2, 0, 1))

    N, H, W = x.shape
    assert y.shape == (1, H, W)
    HW = H * W
    assert tile_max % 128 == 0

    # Lane-dense 2-D views (row-major collapse, no extra HBM pass).
    x2d = x.reshape(N, HW)
    y2d = y.reshape(1, HW)
    x_elem = jnp.dtype(x.dtype).itemsize

    # ---- column tiling: VMEM use independent of H*W ------------------------
    if _round_up(HW, 128) <= tile_max:
        tile_c, cs = HW, 1                 # one full-width tile (always legal)
    else:
        tile_c, cs = tile_max, pl.cdiv(HW, tile_max)

    # ---- row blocking: big streamed blocks, sized per chip -----------------
    if target_block_bytes is None:
        try:
            vmem_cap = getattr(pltpu.get_tpu_info(),
                               "vmem_capacity_bytes", 128 << 20)
        except Exception:
            vmem_cap = 128 << 20
        # v7x (64 MiB VMEM, ~3.2 TB/s) -> 16 MiB blocks; v5e/v6e -> 8 MiB.
        target_block_bytes = (16 << 20) if vmem_cap <= (64 << 20) else (8 << 20)

    if N < 8:
        tb = N                             # full-dim row block for tiny batches
    else:
        tb = max(8, (target_block_bytes // (tile_c * x_elem)) // 8 * 8)
        tb = min(tb, _round_up(N, 8))
    rs = pl.cdiv(N, tb)
    slab = 8 if tb >= 8 else tb
    nslab = tb // slab

    # ---- split work across the two v7x TensorCores -------------------------
    if rs >= 2:
        split, nc, per_core = "rows", 2, pl.cdiv(rs, 2)
        grid = (nc, cs, per_core)
    elif cs >= 2:
        split, nc, per_core = "cols", 2, pl.cdiv(cs, 2)
        grid = (nc, per_core, rs)
    else:
        split, nc, per_core = None, 1, 0
        grid = (1, cs, rs)

    if split == "rows":
        x_map = lambda c, jj, ii: (c * (rs - 1) + (1 - 2 * c) * ii, jj)
        y_map = lambda c, jj, ii: (0, jj)
    elif split == "cols":
        x_map = lambda c, jj, ii: (ii, c * (cs - 1) + (1 - 2 * c) * jj)
        y_map = lambda c, jj, ii: (0, c * (cs - 1) + (1 - 2 * c) * jj)
    else:
        x_map = lambda c, jj, ii: (ii, jj)
        y_map = lambda c, jj, ii: (0, jj)

    kernel = _make_kernel(N=N, HW=HW, tb=tb, tile_c=tile_c, slab=slab,
                          nslab=nslab, rs=rs, cs=cs, split=split,
                          per_core=per_core)

    # Explicit VMEM budget: double-buffered x + y tiles, accumulator,
    # replicated labels, slab-sized f32/i32 temporaries, plus margin.
    vmem_need = (2 * tb * tile_c * x_elem        # x double buffer
                 + 2 * 1 * tile_c * 4            # y double buffer (f32)
                 + 2 * slab * tile_c * 4         # acc + replicated labels
                 + 4 * slab * tile_c * 4         # in-kernel slab temporaries
                 + (2 << 20))                    # margin
    vmem_limit = int(min(max(vmem_need, 32 << 20), 48 << 20))

    partials = pl.pallas_call(
        kernel,
        out_shape=jax.ShapeDtypeStruct((nc, 1, 1), jnp.float32),
        grid_spec=pltpu.PrefetchScalarGridSpec(
            num_scalar_prefetch=0,
            grid=grid,
            in_specs=[
                pl.BlockSpec((tb, tile_c), x_map),   # streamed x (native dtype)
                pl.BlockSpec((1, tile_c), y_map),    # label tile (f32, tiny)
            ],
            out_specs=pl.BlockSpec((1, 1, 1), lambda c, jj, ii: (c, 0, 0)),
            scratch_shapes=[
                pltpu.VMEM((slab, tile_c), jnp.float32),   # accumulator
                pltpu.VMEM((slab, tile_c), jnp.float32),   # replicated labels
            ],
        ),
        compiler_params=pltpu.CompilerParams(
            dimension_semantics=("parallel", "arbitrary", "arbitrary"),
            vmem_limit_bytes=vmem_limit,
        ),
    )(x2d, y2d)

    # torch.mean over the broadcasted (N, H, W) result.
    return jnp.sum(partials) / jnp.float32(N * H * W)


if __name__ == "__main__":
    key = jax.random.PRNGKey(0)

    def reference(x, y):
        x = jnp.asarray(x)
        if x.ndim == 2:
            x = x[None]
        return jnp.mean(jnp.abs(x.astype(jnp.float32)
                                - jnp.asarray(y, jnp.float32)[None, :, :]))

    # Primary case: small shapes consistent with the module's forward.
    kx, ky = jax.random.split(key)
    x_main = jax.random.normal(kx, (2, 16, 16), dtype=jnp.float32)
    y_main = jax.random.normal(ky, (16, 16), dtype=jnp.float32)
    loss = jax.block_until_ready(skeleton_based_loss(x_main, y_main))
    ref = reference(x_main, y_main)
    assert jnp.allclose(loss, ref, rtol=1e-5, atol=1e-6), (loss, ref)

    # Extra tiny configs exercising ragged rows/lanes, column tiling, the slab
    # loop, and both TensorCore split modes (via the tiling test hooks).
    extra = [
        # (N, H, W, dtype, tile_max, target_block_bytes)
        (13, 8, 20, jnp.float32, 16384, 8 * 20 * 4 * 8),   # row split + ragged rows
        (40, 10, 30, jnp.bfloat16, 128, 16 * 128 * 2),     # odd row split + ragged lanes + slab loop
        (5, 10, 30, jnp.float32, 128, 1 << 20),            # col split + tiny batch
    ]
    for idx, (n, h, w, dt, tmax, tbytes) in enumerate(extra):
        ka, kb = jax.random.split(jax.random.fold_in(key, idx + 1))
        xe = jax.random.normal(ka, (n, h, w), dtype=jnp.float32).astype(dt)
        ye = jax.random.normal(kb, (h, w), dtype=jnp.float32)
        got = jax.block_until_ready(
            skeleton_based_loss(xe, ye, tile_max=tmax, target_block_bytes=tbytes))
        want = reference(xe, ye)
        assert jnp.allclose(got, want, rtol=1e-5, atol=1e-6), (idx, got, want)

    print("KERNEL_OK")
</pallas_src>

<mosaic_0001>
module attributes {stable_mosaic.version = 11 : i64} {
  func.func @kernel(%arg0: i32, %arg1: i32, %arg2: i32, %arg3: memref<2x256xf32, #tpu.memory_space<vmem>>, %arg4: memref<1x256xf32, #tpu.memory_space<vmem>>, %arg5: memref<1x1x1xf32, #tpu.memory_space<vmem>>, %arg6: memref<2x256xf32, #tpu.memory_space<vmem>>, %arg7: memref<2x256xf32, #tpu.memory_space<vmem>>) attributes {dimension_semantics = [#tpu.dimension_semantics<parallel>, #tpu.dimension_semantics<arbitrary>, #tpu.dimension_semantics<arbitrary>], iteration_bounds = array<i64: 1, 1, 1>, scalar_prefetch = 0 : i64, scratch_operands = 2 : i64, tpu.core_type = #tpu.core_type<tc>, window_params = [{transform_indices = @transform_0, window_bounds = array<i64: 2, 256>}, {transform_indices = @transform_1, window_bounds = array<i64: 1, 256>}, {transform_indices = @transform_2, window_bounds = array<i64: 1, 1, 1>}]} {
    %c0_i32 = arith.constant 0 : i32
    %0 = arith.cmpi eq, %arg1, %c0_i32 : i32
    %c0_i32_0 = arith.constant 0 : i32
    %1 = arith.cmpi eq, %arg2, %c0_i32_0 : i32
    %2 = arith.andi %0, %1 : i1
    %3 = arith.extui %2 : i1 to i32
    %c0_i32_1 = arith.constant 0 : i32
    %4 = arith.cmpi ne, %3, %c0_i32_1 : i32
    scf.if %4 {
      %cst = arith.constant 0.000000e+00 : f32
      %20 = vector.broadcast %cst : f32 to vector<2x256xf32>
      %c0_14 = arith.constant 0 : index
      %c0_15 = arith.constant 0 : index
      %21 = vector.load %arg6[%c0_14, %c0_15] : memref<2x256xf32, #tpu.memory_space<vmem>>, vector<2x256xf32>
      tpu.vector_store %arg6[%c0_14, %c0_15], %20 {strides = array<i32>} : memref<2x256xf32, #tpu.memory_space<vmem>>, vector<2x256xf32>,
    } else {
    }
    %c0_i32_2 = arith.constant 0 : i32
    %5 = arith.cmpi eq, %arg2, %c0_i32_2 : i32
    %6 = arith.extui %5 : i1 to i32
    %c0_i32_3 = arith.constant 0 : i32
    %7 = arith.cmpi ne, %6, %c0_i32_3 : i32
    scf.if %7 {
      %c0_14 = arith.constant 0 : index
      %c0_15 = arith.constant 0 : index
      %20 = vector.load %arg4[%c0_14, %c0_15] : memref<1x256xf32, #tpu.memory_space<vmem>>, vector<1x256xf32>
      %21 = vector.shape_cast %20 : vector<1x256xf32> to vector<1x256xf32>
      %22 = vector.broadcast %21 : vector<1x256xf32> to vector<2x256xf32>
      %c0_16 = arith.constant 0 : index
      %c0_17 = arith.constant 0 : index
      %23 = vector.load %arg7[%c0_16, %c0_17] : memref<2x256xf32, #tpu.memory_space<vmem>>, vector<2x256xf32>
      tpu.vector_store %arg7[%c0_16, %c0_17], %22 {strides = array<i32>} : memref<2x256xf32, #tpu.memory_space<vmem>>, vector<2x256xf32>,
    } else {
    }
    %c0 = arith.constant 0 : index
    %c0_4 = arith.constant 0 : index
    %8 = vector.load %arg7[%c0, %c0_4] : memref<2x256xf32, #tpu.memory_space<vmem>>, vector<2x256xf32>
    %c0_5 = arith.constant 0 : index
    %c0_6 = arith.constant 0 : index
    %9 = vector.load %arg3[%c0_5, %c0_6] : memref<2x256xf32, #tpu.memory_space<vmem>>, vector<2x256xf32>
    %10 = arith.subf %9, %8 : vector<2x256xf32>
    %11 = math.absf %10 : vector<2x256xf32>
    %c0_7 = arith.constant 0 : index
    %c0_8 = arith.constant 0 : index
    %12 = vector.load %arg6[%c0_7, %c0_8] : memref<2x256xf32, #tpu.memory_space<vmem>>, vector<2x256xf32>
    %13 = arith.addf %12, %11 : vector<2x256xf32>
    %c0_9 = arith.constant 0 : index
    %c0_10 = arith.constant 0 : index
    %14 = vector.load %arg6[%c0_9, %c0_10] : memref<2x256xf32, #tpu.memory_space<vmem>>, vector<2x256xf32>
    tpu.vector_store %arg6[%c0_9, %c0_10], %13 {strides = array<i32>} : memref<2x256xf32, #tpu.memory_space<vmem>>, vector<2x256xf32>,
    %c0_i32_11 = arith.constant 0 : i32
    %15 = arith.cmpi eq, %arg1, %c0_i32_11 : i32
    %c0_i32_12 = arith.constant 0 : i32
    %16 = arith.cmpi eq, %arg2, %c0_i32_12 : i32
    %17 = arith.andi %15, %16 : i1
    %18 = arith.extui %17 : i1 to i32
    %c0_i32_13 = arith.constant 0 : i32
    %19 = arith.cmpi ne, %18, %c0_i32_13 : i32
    scf.if %19 {
      %c0_14 = arith.constant 0 : index
      %c0_15 = arith.constant 0 : index
      %20 = vector.load %arg6[%c0_14, %c0_15] : memref<2x256xf32, #tpu.memory_space<vmem>>, vector<2x256xf32>
      %21 = vector.shape_cast %20 : vector<2x256xf32> to vector<1x2x256xf32>
      %cst = arith.constant dense<0.000000e+00> : vector<1xf32>
      %22 = vector.multi_reduction <add>, %21, %cst [1, 2] : vector<1x2x256xf32> to vector<1xf32>
      %23 = vector.shape_cast %22 : vector<1xf32> to vector<1x1x1xf32>
      %24 = vector.extract %23[0, 0, 0] : f32 from vector<1x1x1xf32>
      %25 = vector.broadcast %24 : f32 to vector<1x1x1xf32>
      %c0_16 = arith.constant 0 : index
      %c0_17 = arith.constant 0 : index
      %c0_18 = arith.constant 0 : index
      %26 = vector.load %arg5[%c0_16, %c0_17, %c0_18] : memref<1x1x1xf32, #tpu.memory_space<vmem>>, vector<1x1x1xf32>
      tpu.vector_store %arg5[%c0_16, %c0_17, %c0_18], %25 {strides = array<i32>} : memref<1x1x1xf32, #tpu.memory_space<vmem>>, vector<1x1x1xf32>,
    } else {
    }
    return
  }
  func.func @transform_0(%arg0: i32, %arg1: i32, %arg2: i32) -> (i32, i32) {
    %c0_i32 = arith.constant 0 : i32
    return %arg2, %arg1 : i32, i32
  }
  func.func @transform_1(%arg0: i32, %arg1: i32, %arg2: i32) -> (i32, i32) {
    %c0_i32 = arith.constant 0 : i32
    %c0_i32_0 = arith.constant 0 : i32
    return %c0_i32, %arg1 : i32, i32
  }
  func.func @transform_2(%arg0: i32, %arg1: i32, %arg2: i32) -> (i32, i32, i32) {
    %c0_i32 = arith.constant 0 : i32
    %c0_i32_0 = arith.constant 0 : i32
    %c0_i32_1 = arith.constant 0 : i32
    return %arg0, %c0_i32, %c0_i32_0 : i32, i32, i32
  }
}

</mosaic_0001>

<llo_original>
// kernel: tpu_custom_call.1
$region0: #{tpu_custom_call.1}
  #allocation0 [shape = 'u32[]', space=smem, size = 0x4, offset = 0x4, fixed_abs, tag = 'smem constant byte address 0x4 - core index']
  #allocation1 [shape = 'u32[144,128]{1,0:T(1,128)}', space=vmem, size = 0x12000, scoped, tag = 'internal scratch']
  #allocation2 [shape = 'f32[2,256]{1,0:T(2,128)}', space=vmem, size = 0x800, scoped, tag = 'scratch operand']
  #allocation3 [shape = 'f32[2,256]{1,0:T(2,128)}', space=vmem, size = 0x800, scoped, tag = 'scratch operand']
  %s0 = inlined_call_operand.hbm [shape: f32[2,256], index: 0, kind: input, shape index: {}]
  %s1 = inlined_call_operand.hbm [shape: f32[1,256], index: 1, kind: input, shape index: {}]
  %s2 = inlined_call_operand.hbm [shape: f32[1,1,1], index: 2, kind: output, shape index: {}]
  %s3 = sld [smem:[#allocation0]]
  $region38: #{tpu_custom_call.1} parent=0
    _
  %s5 = ssub.s32 1, %s3
  %s6 = scalar_select 0, %s5, %s3
  $region1: #{tpu_custom_call.1} parent=0
    #allocation4 [shape = 'u8[2048]{0}', space=vmem, size = 0x800, scoped, tag = 'input window, operand 0, single buffered']
    #allocation5 [shape = 's32[1]{0}', space=sflag, size = 0x4, scoped, tag = 'scoped memory for tpu_custom_call.1']
    #allocation6 [shape = 's32[1]{0}', space=sflag, size = 0x4, scoped, tag = 'scoped memory for tpu_custom_call.1']
    #allocation7 [shape = 'u8[1024]{0}', space=vmem, size = 0x400, scoped, tag = 'input window, operand 1, single buffered']
    #allocation8 [shape = 's32[1]{0}', space=sflag, size = 0x4, scoped, tag = 'scoped memory for tpu_custom_call.1']
    #allocation9 [shape = 'u8[512]{0}', space=vmem, size = 0x400, scoped, tag = 'output window, operand 0, single buffered']
    %7 = vsyncpa [#allocation5], 0
    %8 = vsyncpa [#allocation8], 0
    %9 = vsyncpa [#allocation6], 0
    // Predicated region
    $region2: #{tpu_custom_call.1} parent=1 // pred_check
      _
    $region3: #{tpu_custom_call.1} parent=1 // pred_check_branch
      %11 = sbr.rel (0) target = $region5
    $region4: #{tpu_custom_call.1} parent=1 // pred_region
      %s13 = ssub.s32 64, 64
      %14 = vsyncadd [#allocation5], %s13
      %s16 = sshll.u32 [#allocation4], 4
      %s17 = int_to_ptr.vmem [resolvable:$true] %s16
      %19 = dma.hbm_to_vmem [thread:$0]  %s0, 64, %s17, [#allocation5]
    $region5: #{tpu_custom_call.1} parent=1 // pred_fallthru
      _
    // Predicated region
    $region6: #{tpu_custom_call.1} parent=1 // pred_check
      _
    $region7: #{tpu_custom_call.1} parent=1 // pred_check_branch
      %21 = sbr.rel (0) target = $region9
    $region8: #{tpu_custom_call.1} parent=1 // pred_region
      %s23 = ssub.s32 32, 32
      %24 = vsyncadd [#allocation8], %s23
      %s26 = sshll.u32 [#allocation7], 4
      %s27 = int_to_ptr.vmem [resolvable:$true] %s26
      %29 = dma.hbm_to_vmem [thread:$0]  %s1, 32, %s27, [#allocation8]
    $region9: #{tpu_custom_call.1} parent=1 // pred_fallthru
      _
    // Predicated region
    $region10: #{tpu_custom_call.1} parent=1 // pred_check
      _
    $region11: #{tpu_custom_call.1} parent=1 // pred_check_branch
      %31 = sbr.rel (0) target = $region13
    $region12: #{tpu_custom_call.1} parent=1 // pred_region
      %32 = dma.done [#allocation5], 64
    $region13: #{tpu_custom_call.1} parent=1 // pred_fallthru
      _
    // Predicated region
    $region14: #{tpu_custom_call.1} parent=1 // pred_check
      _
    $region15: #{tpu_custom_call.1} parent=1 // pred_check_branch
      %34 = sbr.rel (0) target = $region17
    $region16: #{tpu_custom_call.1} parent=1 // pred_region
      %35 = dma.done [#allocation8], 32
    $region17: #{tpu_custom_call.1} parent=1 // pred_fallthru
      _
    %p36 = scmp.eq.s32.totalorder 0, 0
    %p37 = scmp.eq.s32.totalorder 0, 0
    %p38 = pnand %p36, %p37
    %p39 = pneg %p38
    // Predicated region
    $region18: #{tpu_custom_call.1} parent=1 // pred_check
      _
    $region19: #{tpu_custom_call.1} parent=1 // pred_check_branch
      %41 = sbr.rel (%p38) target = $region21
    $region20: #{tpu_custom_call.1} parent=1 // pred_region
      %42 = vst [vmem:[#allocation2] sm:$0xf] 0.0
    $region21: #{tpu_custom_call.1} parent=1 // pred_fallthru
      _
    // Predicated region
    $region22: #{tpu_custom_call.1} parent=1 // pred_check
      %p43 = pneg %p37
    $region23: #{tpu_custom_call.1} parent=1 // pred_check_branch
      %45 = sbr.rel (%p43) target = $region25
    $region24: #{tpu_custom_call.1} parent=1 // pred_region
      %v46 = vld [vmem:[#allocation7] sm:$0x3]
      %v48 = vlaneseq
      %v49 = vshrl.u32 %v48, 7
      %v50 = vsub.s32 0, %v49
      %v51 = vrot.slane %v46, %v50
      %v52 = vlaneseq
      %v53 = vshrl.u32 %v52, 7
      %v54 = vsub.s32 1, %v53
      %v55 = vrot.slane %v46, %v54
      %v56 = vcombine.low %v51, %v55
      %v58 = vunpack.c.l.s4 1983009808
      %v59 = vunpack.c.0.s8 %v58
      %v60 = vlaneseq
      %v61 = vshrl.u32 %v60, 7
      %v62 = vsub.s32 %v59, %v61
      %v63 = vrot.slane %v56, %v62
      %65 = vst [vmem:[#allocation3] sm:$0xf] %v63
    $region25: #{tpu_custom_call.1} parent=1 // pred_fallthru
      _
    %v66 = vld [vmem:[#allocation3] sm:$0xf]
    %v67 = vld [vmem:[#allocation4] sm:$0xf]
    %v68 = vsub.f32 %v67, %v66
    %v69 = vand.u32 2147483647, %v68
    %v70 = vld [vmem:[#allocation2] sm:$0xf]
    %v71 = vadd.f32 %v70, %v69
    %72 = vst [vmem:[#allocation2] sm:$0xf] %v71
    // Predicated region
    $region26: #{tpu_custom_call.1} parent=1 // pred_check
      _
    $region27: #{tpu_custom_call.1} parent=1 // pred_check_branch
      %74 = sbr.rel (%p38) target = $region29
    $region28: #{tpu_custom_call.1} parent=1 // pred_region
      %v75 = vld [vmem:[#allocation2] sm:$0xf]
      %v78 = vunpack.c.l.s4 1983009808
      %v79 = vunpack.c.0.s8 %v78
      %v80 = vlaneseq
      %v81 = vshrl.u32 %v80, 7
      %v82 = vsub.s32 %v79, %v81
      %v83 = vrot.slane %v75, %v82
      %v84 = vcombine.high %v83, %v83
      %vm87 = vcmask 1041408
      %v88 = vsel %vm87, %v83, 0.0
      %v89 = vsel %vm87, %v84, 0.0
      %v90 = vadd.f32 %v88, %v89
      %91 = vadd.xlane.f32.xlu0 %v90
      %v92 = vpop.xlane.xlu0 %91
      %v93 = vrot.slane %v92, 4
      %v94 = vadd.f32 %v92, %v93
      %v95 = vrot.slane %v94, 2
      %v96 = vadd.f32 %v94, %v95
      %v97 = vrot.slane %v96, 1
      %v98 = vadd.f32 %v96, %v97
      %s99 = vtos %v98
      %v100 = vstv %s99
      %vm101 = vcmask 0
      %102 = vst.msk [vmem:[#allocation9] sm:$0x1] %vm101, %v100
    $region29: #{tpu_custom_call.1} parent=1 // pred_fallthru
      _
    // Predicated region
    $region30: #{tpu_custom_call.1} parent=1 // pred_check
      _
    $region31: #{tpu_custom_call.1} parent=1 // pred_check_branch
      %104 = sbr.rel (0) target = $region33
    $region32: #{tpu_custom_call.1} parent=1 // pred_region
      %s106 = ssub.s32 16, 16
      %107 = vsyncadd [#allocation6], %s106
      %s109 = sshll.u32 [#allocation9], 4
      %s110 = int_to_ptr.vmem [resolvable:$true] %s109
      %112 = dma.vmem_to_hbm [thread:$0]  %s110, 16, %s2, [#allocation6]
    $region33: #{tpu_custom_call.1} parent=1 // pred_fallthru
      _
    // Predicated region
    $region34: #{tpu_custom_call.1} parent=1 // pred_check
      _
    $region35: #{tpu_custom_call.1} parent=1 // pred_check_branch
      %114 = sbr.rel (0) target = $region37
    $region36: #{tpu_custom_call.1} parent=1 // pred_region
      %115 = dma.done [#allocation6], 16
    $region37: #{tpu_custom_call.1} parent=1 // pred_fallthru
      _
    %116 = vsyncpa [#allocation5], 1
    %117 = vsyncpa [#allocation8], 1
    %118 = vsyncpa [#allocation6], 1

</llo_original>
